<compile_context>
chip_gen: v5e
topology: v5e:2x2
jax: 0.10.0
libtpu: 0.0.40
codegen_flags: <defaults>
</compile_context>

<pallas_src>
import functools

import jax
import jax.numpy as jnp
from jax import lax
from jax.experimental import pallas as pl
from jax.experimental.pallas import tpu as pltpu

_INV_SQRT_2 = 0.7071067811865476


def _ffn_kernel(x_ref, w1_ref, b1_ref, w2_ref, b2_ref, o_ref, *,
                chunk_starts, chunk):
    # x: (tm, H), W1: (H, I), b1: (1, I), W2: (I, H), b2: (1, H) -> o: (tm, H)
    x = x_ref[...]
    if x.dtype != w1_ref.dtype:
        # Never let jnp.dot silently promote W1 to f32: keep the bf16 MXU path.
        x = x.astype(w1_ref.dtype)

    acc = jnp.zeros((x_ref.shape[0], o_ref.shape[1]), jnp.float32)
    for c0 in chunk_starts:  # static offsets -> zero-cost ref views
        # dense_1 chunk: native-dtype operands into the MXU, f32 accumulate.
        h = jnp.dot(x, w1_ref[:, c0:c0 + chunk],
                    preferred_element_type=jnp.float32)
        h = h + b1_ref[:, c0:c0 + chunk].astype(jnp.float32)

        # Exact GELU (erf formulation) in f32 — matches torch.nn.GELU() default.
        # TODO(synk): tanh-approx GELU would run on the EUP (cheaper on
        # v6e/v7x) if exact parity with torch.nn.GELU() were not required.
        h = 0.5 * h * (1.0 + lax.erf(h * _INV_SQRT_2))

        # dense_2 chunk: cast the activation back to the weight dtype so the
        # second matmul also runs the fast MXU path when params are bf16.
        acc = acc + jnp.dot(h.astype(w2_ref.dtype), w2_ref[c0:c0 + chunk, :],
                            preferred_element_type=jnp.float32)

    # dense_2 bias; dropout is identity in eval mode.
    # TODO(synk): training-mode dropout (pltpu.prng_random_bits mask) not emitted.
    o_ref[...] = (acc + b2_ref[...].astype(jnp.float32)).astype(o_ref.dtype)


def _round_up(x, m):
    return (x + m - 1) // m * m


def _pick_chunk(intermediate):
    """I-chunk size: multiple of 256, 256..1024, dividing I; else full width."""
    for c in (1024, 768, 512, 384, 256):
        if intermediate > c and intermediate % c == 0:
            return c
    return intermediate


def _vmem_cap_bytes():
    """~85% of physical VMEM (headroom for compiler scratch); v7x-safe fallback."""
    try:
        cap = int(pltpu.get_tpu_info().vmem_capacity_bytes)
        return max(16 << 20, (cap * 85) // 100)
    except Exception:
        return 48 << 20


def mosaic_bert_feedforward(hidden_states, w1, b1, w2, b2, *, tm=512,
                            vmem_limit_bytes=None):
    """hidden_states: [B, S, H] -> [B, S, H].  Weights stored (in, out)."""
    B, S, H = hidden_states.shape
    I = w1.shape[1]
    M = B * S

    # Row tile: big enough to feed the 256-wide MXU, aligned to the sublane
    # packing of the input dtype (16 rows for bf16, 8 for f32), never larger
    # than the (aligned) problem size.
    row_align = 16 if hidden_states.dtype == jnp.bfloat16 else 8
    tm_eff = min(tm, _round_up(M, row_align))
    tm_eff = _round_up(tm_eff, 256 if tm_eff >= 256 else row_align)

    chunk = _pick_chunk(I)
    chunk_starts = tuple(range(0, I, chunk))

    x2d = hidden_states.reshape(M, H)
    b1_2d = b1.reshape(1, I)
    b2_2d = b2.reshape(1, H)

    if vmem_limit_bytes is None:
        ib = x2d.dtype.itemsize
        wb = w1.dtype.itemsize
        io_bytes = 2 * 2 * tm_eff * H * ib                      # x + out tiles (double-buffered)
        wt_bytes = (H * I + I + I * H + H) * wb                 # weights/biases
        act_bytes = tm_eff * chunk * (4 + wb) + tm_eff * H * 4  # f32 h, cast h, f32 acc
        est = int(1.5 * (io_bytes + 2 * wt_bytes + act_bytes))  # x2: safe if double-buffered
        vmem_limit_bytes = int(min(max(est, 16 << 20), _vmem_cap_bytes()))

    kernel = functools.partial(_ffn_kernel, chunk_starts=chunk_starts,
                               chunk=chunk)

    def build_and_call(single_buffer_weights):
        def const_spec(shape):
            # Constant-index blocks: single-buffer them (DMA'd once anyway).
            if single_buffer_weights:
                try:
                    return pl.BlockSpec(shape, lambda i: (0, 0),
                                        pipeline_mode=pl.Buffered(1))
                except TypeError:
                    pass
            return pl.BlockSpec(shape, lambda i: (0, 0))

        return pl.pallas_call(
            kernel,
            out_shape=jax.ShapeDtypeStruct((M, H), hidden_states.dtype),
            grid_spec=pltpu.PrefetchScalarGridSpec(
                num_scalar_prefetch=0,
                grid=(pl.cdiv(M, tm_eff),),
                in_specs=[
                    pl.BlockSpec((tm_eff, H), lambda i: (i, 0)),  # x tile
                    const_spec((H, I)),                           # W1 (whole, constant)
                    const_spec((1, I)),                           # b1
                    const_spec((I, H)),                           # W2 (whole, constant)
                    const_spec((1, H)),                           # b2
                ],
                out_specs=pl.BlockSpec((tm_eff, H), lambda i: (i, 0)),
            ),
            compiler_params=pltpu.CompilerParams(
                dimension_semantics=("parallel",),
                vmem_limit_bytes=vmem_limit_bytes),
        )(x2d, w1, b1_2d, w2, b2_2d)

    try:
        out = build_and_call(single_buffer_weights=True)
    except Exception:
        # Fallback for jax/libtpu versions that reject Buffered(1) blocks.
        out = build_and_call(single_buffer_weights=False)

    return out.reshape(B, S, H)


if __name__ == "__main__":
    # Small config: hidden_size=32, intermediate_size=128, batch=2, seq=8
    B, S, H, I = 2, 8, 32, 128

    key = jax.random.PRNGKey(0)
    k_x, k_w1, k_b1, k_w2, k_b2 = jax.random.split(key, 5)

    x = jax.random.normal(k_x, (B, S, H), dtype=jnp.float32)
    # Deterministic param init (roughly like nn.Linear's uniform init scale)
    w1 = jax.random.uniform(k_w1, (H, I), minval=-1.0, maxval=1.0) * (1.0 / jnp.sqrt(H))
    b1 = jax.random.uniform(k_b1, (I,), minval=-1.0, maxval=1.0) * (1.0 / jnp.sqrt(H))
    w2 = jax.random.uniform(k_w2, (I, H), minval=-1.0, maxval=1.0) * (1.0 / jnp.sqrt(I))
    b2 = jax.random.uniform(k_b2, (H,), minval=-1.0, maxval=1.0) * (1.0 / jnp.sqrt(I))

    # f32 path — must match the exact-erf reference tightly.
    out = jax.block_until_ready(mosaic_bert_feedforward(x, w1, b1, w2, b2))
    ref = (jax.nn.gelu(x.reshape(-1, H) @ w1 + b1, approximate=False) @ w2 + b2)
    ref = ref.reshape(B, S, H)
    assert out.shape == (B, S, H)
    assert jnp.allclose(out, ref, atol=1e-5, rtol=1e-5)

    # bf16 path — the MXU-native mixed-precision mode the kernel is tuned for.
    xb, w1b, b1b, w2b, b2b = (a.astype(jnp.bfloat16) for a in (x, w1, b1, w2, b2))
    out_bf16 = jax.block_until_ready(mosaic_bert_feedforward(xb, w1b, b1b, w2b, b2b))
    ref_bf16 = (jax.nn.gelu(
        xb.astype(jnp.float32).reshape(-1, H) @ w1b.astype(jnp.float32)
        + b1b.astype(jnp.float32), approximate=False)
        @ w2b.astype(jnp.float32) + b2b.astype(jnp.float32)).reshape(B, S, H)
    assert out_bf16.dtype == jnp.bfloat16
    assert jnp.allclose(out_bf16.astype(jnp.float32), ref_bf16, atol=5e-2, rtol=5e-2)

    print("KERNEL_OK")
</pallas_src>

<mosaic_0001>
module attributes {stable_mosaic.version = 11 : i64} {
  func.func @_ffn_kernel(%arg0: i32, %arg1: memref<16x32xf32, #tpu.memory_space<vmem>>, %arg2: memref<32x128xf32, #tpu.memory_space<vmem>>, %arg3: memref<1x128xf32, #tpu.memory_space<vmem>>, %arg4: memref<128x32xf32, #tpu.memory_space<vmem>>, %arg5: memref<1x32xf32, #tpu.memory_space<vmem>>, %arg6: memref<16x32xf32, #tpu.memory_space<vmem>>) attributes {dimension_semantics = [#tpu.dimension_semantics<parallel>], iteration_bounds = array<i64: 1>, scalar_prefetch = 0 : i64, scratch_operands = 0 : i64, tpu.core_type = #tpu.core_type<tc>, window_params = [{transform_indices = @transform_0, window_bounds = array<i64: 16, 32>}, {pipeline_mode = #tpu.pipeline_mode<synchronous>, transform_indices = @transform_1, window_bounds = array<i64: 32, 128>}, {pipeline_mode = #tpu.pipeline_mode<synchronous>, transform_indices = @transform_2, window_bounds = array<i64: 1, 128>}, {pipeline_mode = #tpu.pipeline_mode<synchronous>, transform_indices = @transform_3, window_bounds = array<i64: 128, 32>}, {pipeline_mode = #tpu.pipeline_mode<synchronous>, transform_indices = @transform_4, window_bounds = array<i64: 1, 32>}, {transform_indices = @transform_5, window_bounds = array<i64: 16, 32>}]} {
    %c0 = arith.constant 0 : index
    %c0_0 = arith.constant 0 : index
    %0 = vector.load %arg1[%c0, %c0_0] : memref<16x32xf32, #tpu.memory_space<vmem>>, vector<16x32xf32>
    %cst = arith.constant 0.000000e+00 : f32
    %1 = vector.broadcast %cst : f32 to vector<16x32xf32>
    %c0_1 = arith.constant 0 : index
    %c0_2 = arith.constant 0 : index
    %2 = vector.load %arg2[%c0_1, %c0_2] : memref<32x128xf32, #tpu.memory_space<vmem>>, vector<32x128xf32>
    %cst_3 = arith.constant dense<0.000000e+00> : vector<16x128xf32>
    %3 = tpu.matmul %0, %2, %cst_3 {dimension_numbers = #tpu.dot_dimension_numbers<[1], [0], [0], [1], [0, 0, 1, 1], [], []>} : vector<16x32xf32>, vector<32x128xf32>, vector<16x128xf32> -> vector<16x128xf32>
    %c0_4 = arith.constant 0 : index
    %c0_5 = arith.constant 0 : index
    %4 = vector.load %arg3[%c0_4, %c0_5] : memref<1x128xf32, #tpu.memory_space<vmem>>, vector<1x128xf32>
    %5 = vector.broadcast %4 : vector<1x128xf32> to vector<16x128xf32>
    %6 = arith.addf %3, %5 : vector<16x128xf32>
    %cst_6 = arith.constant 5.000000e-01 : f32
    %7 = vector.broadcast %cst_6 : f32 to vector<16x128xf32>
    %8 = arith.mulf %7, %6 : vector<16x128xf32>
    %cst_7 = arith.constant 0.707106769 : f32
    %9 = vector.broadcast %cst_7 : f32 to vector<16x128xf32>
    %10 = arith.mulf %6, %9 : vector<16x128xf32>
    %11 = math.erf %10 : vector<16x128xf32>
    %cst_8 = arith.constant 1.000000e+00 : f32
    %12 = vector.broadcast %cst_8 : f32 to vector<16x128xf32>
    %13 = arith.addf %12, %11 : vector<16x128xf32>
    %14 = arith.mulf %8, %13 : vector<16x128xf32>
    %c0_9 = arith.constant 0 : index
    %c0_10 = arith.constant 0 : index
    %15 = vector.load %arg4[%c0_9, %c0_10] : memref<128x32xf32, #tpu.memory_space<vmem>>, vector<128x32xf32>
    %cst_11 = arith.constant dense<0.000000e+00> : vector<16x32xf32>
    %16 = tpu.matmul %14, %15, %cst_11 {dimension_numbers = #tpu.dot_dimension_numbers<[1], [0], [0], [1], [0, 0, 1, 1], [], []>} : vector<16x128xf32>, vector<128x32xf32>, vector<16x32xf32> -> vector<16x32xf32>
    %17 = arith.addf %1, %16 : vector<16x32xf32>
    %c0_12 = arith.constant 0 : index
    %c0_13 = arith.constant 0 : index
    %18 = vector.load %arg5[%c0_12, %c0_13] : memref<1x32xf32, #tpu.memory_space<vmem>>, vector<1x32xf32>
    %19 = vector.broadcast %18 : vector<1x32xf32> to vector<16x32xf32>
    %20 = arith.addf %17, %19 : vector<16x32xf32>
    %c0_14 = arith.constant 0 : index
    %c0_15 = arith.constant 0 : index
    %21 = vector.load %arg6[%c0_14, %c0_15] : memref<16x32xf32, #tpu.memory_space<vmem>>, vector<16x32xf32>
    tpu.vector_store %arg6[%c0_14, %c0_15], %20 {strides = array<i32>} : memref<16x32xf32, #tpu.memory_space<vmem>>, vector<16x32xf32>,
    return
  }
  func.func @transform_0(%arg0: i32) -> (i32, i32) {
    %c0_i32 = arith.constant 0 : i32
    %c0_i32_0 = arith.constant 0 : i32
    return %arg0, %c0_i32 : i32, i32
  }
  func.func @transform_1(%arg0: i32) -> (i32, i32) {
    %c0_i32 = arith.constant 0 : i32
    %c0_i32_0 = arith.constant 0 : i32
    %c0_i32_1 = arith.constant 0 : i32
    return %c0_i32, %c0_i32_0 : i32, i32
  }
  func.func @transform_2(%arg0: i32) -> (i32, i32) {
    %c0_i32 = arith.constant 0 : i32
    %c0_i32_0 = arith.constant 0 : i32
    %c0_i32_1 = arith.constant 0 : i32
    return %c0_i32, %c0_i32_0 : i32, i32
  }
  func.func @transform_3(%arg0: i32) -> (i32, i32) {
    %c0_i32 = arith.constant 0 : i32
    %c0_i32_0 = arith.constant 0 : i32
    %c0_i32_1 = arith.constant 0 : i32
    return %c0_i32, %c0_i32_0 : i32, i32
  }
  func.func @transform_4(%arg0: i32) -> (i32, i32) {
    %c0_i32 = arith.constant 0 : i32
    %c0_i32_0 = arith.constant 0 : i32
    %c0_i32_1 = arith.constant 0 : i32
    return %c0_i32, %c0_i32_0 : i32, i32
  }
  func.func @transform_5(%arg0: i32) -> (i32, i32) {
    %c0_i32 = arith.constant 0 : i32
    %c0_i32_0 = arith.constant 0 : i32
    return %arg0, %c0_i32 : i32, i32
  }
}

module attributes {stable_mosaic.version = 11 : i64} {
  func.func @_ffn_kernel(%arg0: i32, %arg1: memref<16x32xf32, #tpu.memory_space<vmem>>, %arg2: memref<32x128xf32, #tpu.memory_space<vmem>>, %arg3: memref<1x128xf32, #tpu.memory_space<vmem>>, %arg4: memref<128x32xf32, #tpu.memory_space<vmem>>, %arg5: memref<1x32xf32, #tpu.memory_space<vmem>>, %arg6: memref<16x32xf32, #tpu.memory_space<vmem>>) attributes {dimension_semantics = [#tpu.dimension_semantics<parallel>], iteration_bounds = array<i64: 1>, scalar_prefetch = 0 : i64, scratch_operands = 0 : i64, tpu.core_type = #tpu.core_type<tc>, window_params = [{transform_indices = @transform_0, window_bounds = array<i64: 16, 32>}, {pipeline_mode = #tpu.pipeline_mode<synchronous>, transform_indices = @transform_1, window_bounds = array<i64: 32, 128>}, {pipeline_mode = #tpu.pipeline_mode<synchronous>, transform_indices = @transform_2, window_bounds = array<i64: 1, 128>}, {pipeline_mode = #tpu.pipeline_mode<synchronous>, transform_indices = @transform_3, window_bounds = array<i64: 128, 32>}, {pipeline_mode = #tpu.pipeline_mode<synchronous>, transform_indices = @transform_4, window_bounds = array<i64: 1, 32>}, {transform_indices = @transform_5, window_bounds = array<i64: 16, 32>}]} {
    %c0 = arith.constant 0 : index
    %c0_0 = arith.constant 0 : index
    %0 = vector.load %arg1[%c0, %c0_0] : memref<16x32xf32, #tpu.memory_space<vmem>>, vector<16x32xf32>
    %cst = arith.constant 0.000000e+00 : f32
    %1 = vector.broadcast %cst : f32 to vector<16x32xf32>
    %c0_1 = arith.constant 0 : index
    %c0_2 = arith.constant 0 : index
    %2 = vector.load %arg2[%c0_1, %c0_2] : memref<32x128xf32, #tpu.memory_space<vmem>>, vector<32x128xf32>
    %cst_3 = arith.constant dense<0.000000e+00> : vector<16x128xf32>
    %3 = tpu.matmul %0, %2, %cst_3 {dimension_numbers = #tpu.dot_dimension_numbers<[1], [0], [0], [1], [0, 0, 1, 1], [], []>} : vector<16x32xf32>, vector<32x128xf32>, vector<16x128xf32> -> vector<16x128xf32>
    %c0_4 = arith.constant 0 : index
    %c0_5 = arith.constant 0 : index
    %4 = vector.load %arg3[%c0_4, %c0_5] : memref<1x128xf32, #tpu.memory_space<vmem>>, vector<1x128xf32>
    %5 = vector.broadcast %4 : vector<1x128xf32> to vector<16x128xf32>
    %6 = arith.addf %3, %5 : vector<16x128xf32>
    %cst_6 = arith.constant 5.000000e-01 : f32
    %7 = vector.broadcast %cst_6 : f32 to vector<16x128xf32>
    %8 = arith.mulf %7, %6 : vector<16x128xf32>
    %cst_7 = arith.constant 0.707106769 : f32
    %9 = vector.broadcast %cst_7 : f32 to vector<16x128xf32>
    %10 = arith.mulf %6, %9 : vector<16x128xf32>
    %11 = math.erf %10 : vector<16x128xf32>
    %cst_8 = arith.constant 1.000000e+00 : f32
    %12 = vector.broadcast %cst_8 : f32 to vector<16x128xf32>
    %13 = arith.addf %12, %11 : vector<16x128xf32>
    %14 = arith.mulf %8, %13 : vector<16x128xf32>
    %c0_9 = arith.constant 0 : index
    %c0_10 = arith.constant 0 : index
    %15 = vector.load %arg4[%c0_9, %c0_10] : memref<128x32xf32, #tpu.memory_space<vmem>>, vector<128x32xf32>
    %cst_11 = arith.constant dense<0.000000e+00> : vector<16x32xf32>
    %16 = tpu.matmul %14, %15, %cst_11 {dimension_numbers = #tpu.dot_dimension_numbers<[1], [0], [0], [1], [0, 0, 1, 1], [], []>} : vector<16x128xf32>, vector<128x32xf32>, vector<16x32xf32> -> vector<16x32xf32>
    %17 = arith.addf %1, %16 : vector<16x32xf32>
    %c0_12 = arith.constant 0 : index
    %c0_13 = arith.constant 0 : index
    %18 = vector.load %arg5[%c0_12, %c0_13] : memref<1x32xf32, #tpu.memory_space<vmem>>, vector<1x32xf32>
    %19 = vector.broadcast %18 : vector<1x32xf32> to vector<16x32xf32>
    %20 = arith.addf %17, %19 : vector<16x32xf32>
    %c0_14 = arith.constant 0 : index
    %c0_15 = arith.constant 0 : index
    %21 = vector.load %arg6[%c0_14, %c0_15] : memref<16x32xf32, #tpu.memory_space<vmem>>, vector<16x32xf32>
    tpu.vector_store %arg6[%c0_14, %c0_15], %20 {strides = array<i32>} : memref<16x32xf32, #tpu.memory_space<vmem>>, vector<16x32xf32>,
    return
  }
  func.func @transform_0(%arg0: i32) -> (i32, i32) {
    %c0_i32 = arith.constant 0 : i32
    %c0_i32_0 = arith.constant 0 : i32
    return %arg0, %c0_i32 : i32, i32
  }
  func.func @transform_1(%arg0: i32) -> (i32, i32) {
    %c0_i32 = arith.constant 0 : i32
    %c0_i32_0 = arith.constant 0 : i32
    %c0_i32_1 = arith.constant 0 : i32
    return %c0_i32, %c0_i32_0 : i32, i32
  }
  func.func @transform_2(%arg0: i32) -> (i32, i32) {
    %c0_i32 = arith.constant 0 : i32
    %c0_i32_0 = arith.constant 0 : i32
    %c0_i32_1 = arith.constant 0 : i32
    return %c0_i32, %c0_i32_0 : i32, i32
  }
  func.func @transform_3(%arg0: i32) -> (i32, i32) {
    %c0_i32 = arith.constant 0 : i32
    %c0_i32_0 = arith.constant 0 : i32
    %c0_i32_1 = arith.constant 0 : i32
    return %c0_i32, %c0_i32_0 : i32, i32
  }
  func.func @transform_4(%arg0: i32) -> (i32, i32) {
    %c0_i32 = arith.constant 0 : i32
    %c0_i32_0 = arith.constant 0 : i32
    %c0_i32_1 = arith.constant 0 : i32
    return %c0_i32, %c0_i32_0 : i32, i32
  }
  func.func @transform_5(%arg0: i32) -> (i32, i32) {
    %c0_i32 = arith.constant 0 : i32
    %c0_i32_0 = arith.constant 0 : i32
    return %arg0, %c0_i32 : i32, i32
  }
}

</mosaic_0001>

<llo_original>
// kernel: tpu_custom_call.1
$region0: #{tpu_custom_call.1}
  #allocation0 [shape = 'u32[]', space=smem, size = 0x4, offset = 0x4, fixed_abs, tag = 'smem constant byte address 0x4 - core index']
  #allocation1 [shape = 'u32[72,128]{1,0:T(1,128)}', space=vmem, size = 0x9000, scoped, tag = 'internal scratch']
  %s0 = inlined_call_operand.vmem [shape: f32[16,32], index: 0, kind: input, shape index: {}]
  %s1 = inlined_call_operand.vmem [shape: f32[32,128], index: 1, kind: input, shape index: {}]
  %s2 = inlined_call_operand.vmem [shape: f32[1,128], index: 2, kind: input, shape index: {}]
  %s3 = inlined_call_operand.vmem [shape: f32[128,32], index: 3, kind: input, shape index: {}]
  %s4 = inlined_call_operand.vmem [shape: f32[1,32], index: 4, kind: input, shape index: {}]
  %s5 = inlined_call_operand.hbm [shape: f32[16,32], index: 5, kind: output, shape index: {}]
  %s6 = sld [smem:[#allocation0]]
  $region30: #{tpu_custom_call.1} parent=0
    _
  %s8 = ssub.s32 1, %s6
  %s9 = scalar_select 0, %s8, %s6
  $region1: #{tpu_custom_call.1} parent=0
    #allocation2 [shape = 'u8[8192]{0}', space=vmem, size = 0x2000, scoped, tag = 'output window, operand 0, single buffered']
    #allocation3 [shape = 's32[1]{0}', space=sflag, size = 0x4, scoped, tag = 'scoped memory for tpu_custom_call.1']
    %10 = vsyncpa [#allocation3], 0
    // Predicated region
    $region2: #{tpu_custom_call.1} parent=1 // pred_check
      _
    $region3: #{tpu_custom_call.1} parent=1 // pred_check_branch
      %12 = sbr.rel (0) target = $region5
    $region4: #{tpu_custom_call.1} parent=1 // pred_region
      _
    $region5: #{tpu_custom_call.1} parent=1 // pred_fallthru
      _
    // Predicated region
    $region6: #{tpu_custom_call.1} parent=1 // pred_check
      _
    $region7: #{tpu_custom_call.1} parent=1 // pred_check_branch
      %14 = sbr.rel (0) target = $region9
    $region8: #{tpu_custom_call.1} parent=1 // pred_region
      _
    $region9: #{tpu_custom_call.1} parent=1 // pred_fallthru
      _
    // Predicated region
    $region10: #{tpu_custom_call.1} parent=1 // pred_check
      _
    $region11: #{tpu_custom_call.1} parent=1 // pred_check_branch
      %16 = sbr.rel (0) target = $region13
    $region12: #{tpu_custom_call.1} parent=1 // pred_region
      _
    $region13: #{tpu_custom_call.1} parent=1 // pred_fallthru
      _
    // Predicated region
    $region14: #{tpu_custom_call.1} parent=1 // pred_check
      _
    $region15: #{tpu_custom_call.1} parent=1 // pred_check_branch
      %18 = sbr.rel (0) target = $region17
    $region16: #{tpu_custom_call.1} parent=1 // pred_region
      _
    $region17: #{tpu_custom_call.1} parent=1 // pred_fallthru
      _
    // Predicated region
    $region18: #{tpu_custom_call.1} parent=1 // pred_check
      _
    $region19: #{tpu_custom_call.1} parent=1 // pred_check_branch
      %20 = sbr.rel (0) target = $region21
    $region20: #{tpu_custom_call.1} parent=1 // pred_region
      _
    $region21: #{tpu_custom_call.1} parent=1 // pred_fallthru
      _
    %v21 = vld [vmem:[%s0] sm:$0xff]
    %v22 = vld [vmem:[%s0 + $0x8] sm:$0xff]
    %v23 = vld [vmem:[%s1] sm:$0xff]
    %v24 = vld [vmem:[%s1 + $0x8] sm:$0xff]
    %v25 = vld [vmem:[%s1 + $0x10] sm:$0xff]
    %v26 = vld [vmem:[%s1 + $0x18] sm:$0xff]
    %v27 = vld [vmem:[%s2] sm:$0x1]
    %v29 = vperm.slane %v27, 0
    %vm31 = vcmask 261120
    %v33 = vsel %vm31, %v21, 0
    %v36 = vsel %vm31, %v22, 0
    %38 = vmatpush.msra.mxu0 0.0
    %39 = vmatpush.msra.mxu0 0.0
    %40 = vmatpush.msra.mxu0 0.0
    %41 = vmatpush.msra.mxu0 0.0
    %42 = vmatpush.msra.mxu0 0.0
    %43 = vmatpush.msra.mxu0 0.0
    %44 = vmatpush.msra.mxu0 0.0
    %45 = vmatpush.msra.mxu0 0.0
    %46 = vmatpush.msra.mxu0 0.0
    %47 = vmatpush.msra.mxu0 0.0
    %48 = vmatpush.msra.mxu0 0.0
    %49 = vmatpush.msra.mxu0 0.0
    %50 = vmatpush.msra.mxu0 %v26
    %51 = vmatpush.msra.mxu0 %v25
    %52 = vmatpush.msra.mxu0 %v24
    %53 = vmatpush.msra.mxu0 %v23
    %54 = vmatmul.f32.gmra.mxu0 %v33
    %v55 = vpop.f32.mrf.mxu0
    %v56 = vadd.f32 %v29, %v55
    %57 = vmatmul.f32.gmra.mxu0 %v36
    %v58 = vpop.f32.mrf.mxu0
    %v59 = vadd.f32 %v29, %v58
    %60 = vdwg.mxu0
    %v61 = vmul.f32 %v56, 0.5
    %v62 = vmul.f32 %v59, 0.5
    %v63 = vmul.f32 %v56, 0.70710677
    %v64 = vmul.f32 %v59, 0.70710677
    %v65 = vmul.f32 %v63, %v63
    %v66 = vmin.f32 16.0, %v65
    %v67 = vmul.f32 %v66, 2.1237322e-06
    %v68 = vadd.f32 %v67, 0.00028619796
    %v69 = vmul.f32 %v66, %v68
    %v70 = vadd.f32 %v69, 0.0036580483
    %v71 = vmul.f32 %v66, %v70
    %v72 = vadd.f32 %v71, 0.05243302
    %v73 = vmul.f32 %v66, %v72
    %v74 = vadd.f32 %v73, 0.18741608
    %v75 = vmul.f32 %v66, %v74
    %v76 = vadd.f32 %v75, 1.1283791
    %v77 = vmul.f32 %v63, %v76
    %v78 = vmul.f32 %v66, 3.8918573e-05
    %v79 = vadd.f32 %v78, 0.001143296
    %v80 = vmul.f32 %v66, %v79
    %v81 = vadd.f32 %v80, 0.014752088
    %v82 = vmul.f32 %v66, %v81
    %v83 = vadd.f32 %v82, 0.112945676
    %v84 = vmul.f32 %v66, %v83
    %v85 = vadd.f32 %v84, 0.4994258
    %v86 = vmul.f32 %v66, %v85
    %v87 = vadd.f32 %v86, 1.0
    %v88 = vrcp.pop %v87
    %v89 = vmul.f32 %v87, %v88
    %v90 = vsub.f32 1.0, %v89
    %v91 = vmul.f32 %v88, %v90
    %v92 = vadd.f32 %v88, %v91
    %vm93 = vweird.f32 %v87
    %vm94 = vweird.f32 %v88
    %vm95 = vmor %vm93, %vm94
    %v96 = vsel %vm95, %v88, %v92
    %v97 = vand.u32 2147483647, %v87
    %vm98 = vcmp.eq.f32.partialorder %v97, 8.507059e+37
    %v99 = vand.u32 %v87, 2147483648
    %v100 = vor.u32 1.1754944e-38, %v99
    %v101 = vsel %vm98, %v100, %v96
    %v102 = vmul.f32 %v77, %v101
    %v103 = vmin.f32 %v102, 1.0
    %v104 = vmax.f32 %v103, -1.0
    %v105 = vmul.f32 %v64, %v64
    %v106 = vmin.f32 16.0, %v105
    %v107 = vmul.f32 %v106, 2.1237322e-06
    %v108 = vadd.f32 %v107, 0.00028619796
    %v109 = vmul.f32 %v106, %v108
    %v110 = vadd.f32 %v109, 0.0036580483
    %v111 = vmul.f32 %v106, %v110
    %v112 = vadd.f32 %v111, 0.05243302
    %v113 = vmul.f32 %v106, %v112
    %v114 = vadd.f32 %v113, 0.18741608
    %v115 = vmul.f32 %v106, %v114
    %v116 = vadd.f32 %v115, 1.1283791
    %v117 = vmul.f32 %v64, %v116
    %v118 = vmul.f32 %v106, 3.8918573e-05
    %v119 = vadd.f32 %v118, 0.001143296
    %v120 = vmul.f32 %v106, %v119
    %v121 = vadd.f32 %v120, 0.014752088
    %v122 = vmul.f32 %v106, %v121
    %v123 = vadd.f32 %v122, 0.112945676
    %v124 = vmul.f32 %v106, %v123
    %v125 = vadd.f32 %v124, 0.4994258
    %v126 = vmul.f32 %v106, %v125
    %v127 = vadd.f32 %v126, 1.0
    %v128 = vrcp.pop %v127
    %v129 = vmul.f32 %v127, %v128
    %v130 = vsub.f32 1.0, %v129
    %v131 = vmul.f32 %v128, %v130
    %v132 = vadd.f32 %v128, %v131
    %vm133 = vweird.f32 %v127
    %vm134 = vweird.f32 %v128
    %vm135 = vmor %vm133, %vm134
    %v136 = vsel %vm135, %v128, %v132
    %v137 = vand.u32 2147483647, %v127
    %vm138 = vcmp.eq.f32.partialorder %v137, 8.507059e+37
    %v139 = vand.u32 %v127, 2147483648
    %v140 = vor.u32 1.1754944e-38, %v139
    %v141 = vsel %vm138, %v140, %v136
    %v142 = vmul.f32 %v117, %v141
    %v143 = vmin.f32 %v142, 1.0
    %v144 = vmax.f32 %v143, -1.0
    %v145 = vadd.f32 %v104, 1.0
    %v146 = vadd.f32 %v144, 1.0
    %v147 = vmul.f32 %v61, %v145
    %v148 = vmul.f32 %v62, %v146
    %v149 = vld [vmem:[%s3] sm:$0xff]
    %v150 = vld [vmem:[%s3 + $0x8] sm:$0xff]
    %v151 = vld [vmem:[%s3 + $0x10] sm:$0xff]
    %v152 = vld [vmem:[%s3 + $0x18] sm:$0xff]
    %v153 = vld [vmem:[%s3 + $0x20] sm:$0xff]
    %v154 = vld [vmem:[%s3 + $0x28] sm:$0xff]
    %v155 = vld [vmem:[%s3 + $0x30] sm:$0xff]
    %v156 = vld [vmem:[%s3 + $0x38] sm:$0xff]
    %v157 = vld [vmem:[%s3 + $0x40] sm:$0xff]
    %v158 = vld [vmem:[%s3 + $0x48] sm:$0xff]
    %v159 = vld [vmem:[%s3 + $0x50] sm:$0xff]
    %v160 = vld [vmem:[%s3 + $0x58] sm:$0xff]
    %v161 = vld [vmem:[%s3 + $0x60] sm:$0xff]
    %v162 = vld [vmem:[%s3 + $0x68] sm:$0xff]
    %v163 = vld [vmem:[%s3 + $0x70] sm:$0xff]
    %v164 = vld [vmem:[%s3 + $0x78] sm:$0xff]
    %v165 = vld [vmem:[%s4] sm:$0x1]
    %v167 = vperm.slane %v165, 0
    %169 = vmatpush.msra.mxu0 %v164
    %170 = vmatpush.msra.mxu0 %v163
    %171 = vmatpush.msra.mxu0 %v162
    %172 = vmatpush.msra.mxu0 %v161
    %173 = vmatpush.msra.mxu0 %v160
    %174 = vmatpush.msra.mxu0 %v159
    %175 = vmatpush.msra.mxu0 %v158
    %176 = vmatpush.msra.mxu0 %v157
    %177 = vmatpush.msra.mxu0 %v156
    %178 = vmatpush.msra.mxu0 %v155
    %179 = vmatpush.msra.mxu0 %v154
    %180 = vmatpush.msra.mxu0 %v153
    %181 = vmatpush.msra.mxu0 %v152
    %182 = vmatpush.msra.mxu0 %v151
    %183 = vmatpush.msra.mxu0 %v150
    %184 = vmatpush.msra.mxu0 %v149
    %185 = vmatmul.f32.gmra.mxu0 %v147
    %v186 = vpop.f32.mrf.mxu0
    %v187 = vadd.f32 %v167, %v186
    %188 = vmatmul.f32.gmra.mxu0 %v148
    %v189 = vpop.f32.mrf.mxu0
    %v190 = vadd.f32 %v167, %v189
    %191 = vdwg.mxu0
    %192 = vst.msk [vmem:[#allocation2] sm:$0xff] %vm31, %v187
    %193 = vst.msk [vmem:[#allocation2 + $0x8] sm:$0xff] %vm31, %v190
    // Predicated region
    $region22: #{tpu_custom_call.1} parent=1 // pred_check
      _
    $region23: #{tpu_custom_call.1} parent=1 // pred_check_branch
      %195 = sbr.rel (0) target = $region25
    $region24: #{tpu_custom_call.1} parent=1 // pred_region
      %197 = vsyncadd [#allocation3], 0
      %s198 = sshll.u32 [#allocation2], 4
      %s199 = int_to_ptr.vmem [resolvable:$true] %s198
      %s200 = sshll.u32 %s5, 4
      %s201 = int_to_ptr.hbm [resolvable:$true] %s200
      %206 = dma.vmem_to_hbm [thread:$0]  %s199, 256, %s201, [#allocation3], 128, 128, 8
    $region25: #{tpu_custom_call.1} parent=1 // pred_fallthru
      _
    // Predicated region
    $region26: #{tpu_custom_call.1} parent=1 // pred_check
      _
    $region27: #{tpu_custom_call.1} parent=1 // pred_check_branch
      %208 = sbr.rel (0) target = $region29
    $region28: #{tpu_custom_call.1} parent=1 // pred_region
      %210 = dma.done [#allocation3], 256
    $region29: #{tpu_custom_call.1} parent=1 // pred_fallthru
      _
    %211 = vsyncpa [#allocation3], 1

// kernel: tpu_custom_call.1
$region0: #{tpu_custom_call.1}
  #allocation0 [shape = 'u32[]', space=smem, size = 0x4, offset = 0x4, fixed_abs, tag = 'smem constant byte address 0x4 - core index']
  #allocation1 [shape = 'u32[72,128]{1,0:T(1,128)}', space=vmem, size = 0x9000, scoped, tag = 'internal scratch']
  %s0 = inlined_call_operand.vmem [shape: f32[16,32], index: 0, kind: input, shape index: {}]
  %s1 = inlined_call_operand.vmem [shape: f32[32,128], index: 1, kind: input, shape index: {}]
  %s2 = inlined_call_operand.vmem [shape: f32[1,128], index: 2, kind: input, shape index: {}]
  %s3 = inlined_call_operand.vmem [shape: f32[128,32], index: 3, kind: input, shape index: {}]
  %s4 = inlined_call_operand.vmem [shape: f32[1,32], index: 4, kind: input, shape index: {}]
  %s5 = inlined_call_operand.hbm [shape: f32[16,32], index: 5, kind: output, shape index: {}]
  %s6 = sld [smem:[#allocation0]]
  $region30: #{tpu_custom_call.1} parent=0
    _
  %s8 = ssub.s32 1, %s6
  %s9 = scalar_select 0, %s8, %s6
  $region1: #{tpu_custom_call.1} parent=0
    #allocation2 [shape = 'u8[8192]{0}', space=vmem, size = 0x2000, scoped, tag = 'output window, operand 0, single buffered']
    #allocation3 [shape = 's32[1]{0}', space=sflag, size = 0x4, scoped, tag = 'scoped memory for tpu_custom_call.1']
    %10 = vsyncpa [#allocation3], 0
    // Predicated region
    $region2: #{tpu_custom_call.1} parent=1 // pred_check
      _
    $region3: #{tpu_custom_call.1} parent=1 // pred_check_branch
      %12 = sbr.rel (0) target = $region5
    $region4: #{tpu_custom_call.1} parent=1 // pred_region
      _
    $region5: #{tpu_custom_call.1} parent=1 // pred_fallthru
      _
    // Predicated region
    $region6: #{tpu_custom_call.1} parent=1 // pred_check
      _
    $region7: #{tpu_custom_call.1} parent=1 // pred_check_branch
      %14 = sbr.rel (0) target = $region9
    $region8: #{tpu_custom_call.1} parent=1 // pred_region
      _
    $region9: #{tpu_custom_call.1} parent=1 // pred_fallthru
      _
    // Predicated region
    $region10: #{tpu_custom_call.1} parent=1 // pred_check
      _
    $region11: #{tpu_custom_call.1} parent=1 // pred_check_branch
      %16 = sbr.rel (0) target = $region13
    $region12: #{tpu_custom_call.1} parent=1 // pred_region
      _
    $region13: #{tpu_custom_call.1} parent=1 // pred_fallthru
      _
    // Predicated region
    $region14: #{tpu_custom_call.1} parent=1 // pred_check
      _
    $region15: #{tpu_custom_call.1} parent=1 // pred_check_branch
      %18 = sbr.rel (0) target = $region17
    $region16: #{tpu_custom_call.1} parent=1 // pred_region
      _
    $region17: #{tpu_custom_call.1} parent=1 // pred_fallthru
      _
    // Predicated region
    $region18: #{tpu_custom_call.1} parent=1 // pred_check
      _
    $region19: #{tpu_custom_call.1} parent=1 // pred_check_branch
      %20 = sbr.rel (0) target = $region21
    $region20: #{tpu_custom_call.1} parent=1 // pred_region
      _
    $region21: #{tpu_custom_call.1} parent=1 // pred_fallthru
      _
    %v21 = vld [vmem:[%s0] sm:$0xff]
    %v22 = vld [vmem:[%s0 + $0x8] sm:$0xff]
    %v23 = vld [vmem:[%s1] sm:$0xff]
    %v24 = vld [vmem:[%s1 + $0x8] sm:$0xff]
    %v25 = vld [vmem:[%s1 + $0x10] sm:$0xff]
    %v26 = vld [vmem:[%s1 + $0x18] sm:$0xff]
    %v27 = vld [vmem:[%s2] sm:$0x1]
    %v29 = vperm.slane %v27, 0
    %vm31 = vcmask 261120
    %v33 = vsel %vm31, %v21, 0
    %v36 = vsel %vm31, %v22, 0
    %38 = vmatpush.msra.mxu0 0.0
    %39 = vmatpush.msra.mxu0 0.0
    %40 = vmatpush.msra.mxu0 0.0
    %41 = vmatpush.msra.mxu0 0.0
    %42 = vmatpush.msra.mxu0 0.0
    %43 = vmatpush.msra.mxu0 0.0
    %44 = vmatpush.msra.mxu0 0.0
    %45 = vmatpush.msra.mxu0 0.0
    %46 = vmatpush.msra.mxu0 0.0
    %47 = vmatpush.msra.mxu0 0.0
    %48 = vmatpush.msra.mxu0 0.0
    %49 = vmatpush.msra.mxu0 0.0
    %50 = vmatpush.msra.mxu0 %v26
    %51 = vmatpush.msra.mxu0 %v25
    %52 = vmatpush.msra.mxu0 %v24
    %53 = vmatpush.msra.mxu0 %v23
    %54 = vmatmul.f32.gmra.mxu0 %v33
    %v55 = vpop.f32.mrf.mxu0
    %v56 = vadd.f32 %v29, %v55
    %57 = vmatmul.f32.gmra.mxu0 %v36
    %v58 = vpop.f32.mrf.mxu0
    %v59 = vadd.f32 %v29, %v58
    %60 = vdwg.mxu0
    %v61 = vmul.f32 %v56, 0.5
    %v62 = vmul.f32 %v59, 0.5
    %v63 = vmul.f32 %v56, 0.70710677
    %v64 = vmul.f32 %v59, 0.70710677
    %v65 = vmul.f32 %v63, %v63
    %v66 = vmin.f32 16.0, %v65
    %v67 = vmul.f32 %v66, 2.1237322e-06
    %v68 = vadd.f32 %v67, 0.00028619796
    %v69 = vmul.f32 %v66, %v68
    %v70 = vadd.f32 %v69, 0.0036580483
    %v71 = vmul.f32 %v66, %v70
    %v72 = vadd.f32 %v71, 0.05243302
    %v73 = vmul.f32 %v66, %v72
    %v74 = vadd.f32 %v73, 0.18741608
    %v75 = vmul.f32 %v66, %v74
    %v76 = vadd.f32 %v75, 1.1283791
    %v77 = vmul.f32 %v63, %v76
    %v78 = vmul.f32 %v66, 3.8918573e-05
    %v79 = vadd.f32 %v78, 0.001143296
    %v80 = vmul.f32 %v66, %v79
    %v81 = vadd.f32 %v80, 0.014752088
    %v82 = vmul.f32 %v66, %v81
    %v83 = vadd.f32 %v82, 0.112945676
    %v84 = vmul.f32 %v66, %v83
    %v85 = vadd.f32 %v84, 0.4994258
    %v86 = vmul.f32 %v66, %v85
    %v87 = vadd.f32 %v86, 1.0
    %v88 = vrcp.pop %v87
    %v89 = vmul.f32 %v87, %v88
    %v90 = vsub.f32 1.0, %v89
    %v91 = vmul.f32 %v88, %v90
    %v92 = vadd.f32 %v88, %v91
    %vm93 = vweird.f32 %v87
    %vm94 = vweird.f32 %v88
    %vm95 = vmor %vm93, %vm94
    %v96 = vsel %vm95, %v88, %v92
    %v97 = vand.u32 2147483647, %v87
    %vm98 = vcmp.eq.f32.partialorder %v97, 8.507059e+37
    %v99 = vand.u32 %v87, 2147483648
    %v100 = vor.u32 1.1754944e-38, %v99
    %v101 = vsel %vm98, %v100, %v96
    %v102 = vmul.f32 %v77, %v101
    %v103 = vmin.f32 %v102, 1.0
    %v104 = vmax.f32 %v103, -1.0
    %v105 = vmul.f32 %v64, %v64
    %v106 = vmin.f32 16.0, %v105
    %v107 = vmul.f32 %v106, 2.1237322e-06
    %v108 = vadd.f32 %v107, 0.00028619796
    %v109 = vmul.f32 %v106, %v108
    %v110 = vadd.f32 %v109, 0.0036580483
    %v111 = vmul.f32 %v106, %v110
    %v112 = vadd.f32 %v111, 0.05243302
    %v113 = vmul.f32 %v106, %v112
    %v114 = vadd.f32 %v113, 0.18741608
    %v115 = vmul.f32 %v106, %v114
    %v116 = vadd.f32 %v115, 1.1283791
    %v117 = vmul.f32 %v64, %v116
    %v118 = vmul.f32 %v106, 3.8918573e-05
    %v119 = vadd.f32 %v118, 0.001143296
    %v120 = vmul.f32 %v106, %v119
    %v121 = vadd.f32 %v120, 0.014752088
    %v122 = vmul.f32 %v106, %v121
    %v123 = vadd.f32 %v122, 0.112945676
    %v124 = vmul.f32 %v106, %v123
    %v125 = vadd.f32 %v124, 0.4994258
    %v126 = vmul.f32 %v106, %v125
    %v127 = vadd.f32 %v126, 1.0
    %v128 = vrcp.pop %v127
    %v129 = vmul.f32 %v127, %v128
    %v130 = vsub.f32 1.0, %v129
    %v131 = vmul.f32 %v128, %v130
    %v132 = vadd.f32 %v128, %v131
    %vm133 = vweird.f32 %v127
    %vm134 = vweird.f32 %v128
    %vm135 = vmor %vm133, %vm134
    %v136 = vsel %vm135, %v128, %v132
    %v137 = vand.u32 2147483647, %v127
    %vm138 = vcmp.eq.f32.partialorder %v137, 8.507059e+37
    %v139 = vand.u32 %v127, 2147483648
    %v140 = vor.u32 1.1754944e-38, %v139
    %v141 = vsel %vm138, %v140, %v136
    %v142 = vmul.f32 %v117, %v141
    %v143 = vmin.f32 %v142, 1.0
    %v144 = vmax.f32 %v143, -1.0
    %v145 = vadd.f32 %v104, 1.0
    %v146 = vadd.f32 %v144, 1.0
    %v147 = vmul.f32 %v61, %v145
    %v148 = vmul.f32 %v62, %v146
    %v149 = vld [vmem:[%s3] sm:$0xff]
    %v150 = vld [vmem:[%s3 + $0x8] sm:$0xff]
    %v151 = vld [vmem:[%s3 + $0x10] sm:$0xff]
    %v152 = vld [vmem:[%s3 + $0x18] sm:$0xff]
    %v153 = vld [vmem:[%s3 + $0x20] sm:$0xff]
    %v154 = vld [vmem:[%s3 + $0x28] sm:$0xff]
    %v155 = vld [vmem:[%s3 + $0x30] sm:$0xff]
    %v156 = vld [vmem:[%s3 + $0x38] sm:$0xff]
    %v157 = vld [vmem:[%s3 + $0x40] sm:$0xff]
    %v158 = vld [vmem:[%s3 + $0x48] sm:$0xff]
    %v159 = vld [vmem:[%s3 + $0x50] sm:$0xff]
    %v160 = vld [vmem:[%s3 + $0x58] sm:$0xff]
    %v161 = vld [vmem:[%s3 + $0x60] sm:$0xff]
    %v162 = vld [vmem:[%s3 + $0x68] sm:$0xff]
    %v163 = vld [vmem:[%s3 + $0x70] sm:$0xff]
    %v164 = vld [vmem:[%s3 + $0x78] sm:$0xff]
    %v165 = vld [vmem:[%s4] sm:$0x1]
    %v167 = vperm.slane %v165, 0
    %169 = vmatpush.msra.mxu0 %v164
    %170 = vmatpush.msra.mxu0 %v163
    %171 = vmatpush.msra.mxu0 %v162
    %172 = vmatpush.msra.mxu0 %v161
    %173 = vmatpush.msra.mxu0 %v160
    %174 = vmatpush.msra.mxu0 %v159
    %175 = vmatpush.msra.mxu0 %v158
    %176 = vmatpush.msra.mxu0 %v157
    %177 = vmatpush.msra.mxu0 %v156
    %178 = vmatpush.msra.mxu0 %v155
    %179 = vmatpush.msra.mxu0 %v154
    %180 = vmatpush.msra.mxu0 %v153
    %181 = vmatpush.msra.mxu0 %v152
    %182 = vmatpush.msra.mxu0 %v151
    %183 = vmatpush.msra.mxu0 %v150
    %184 = vmatpush.msra.mxu0 %v149
    %185 = vmatmul.f32.gmra.mxu0 %v147
    %v186 = vpop.f32.mrf.mxu0
    %v187 = vadd.f32 %v167, %v186
    %188 = vmatmul.f32.gmra.mxu0 %v148
    %v189 = vpop.f32.mrf.mxu0
    %v190 = vadd.f32 %v167, %v189
    %191 = vdwg.mxu0
    %192 = vst.msk [vmem:[#allocation2] sm:$0xff] %vm31, %v187
    %193 = vst.msk [vmem:[#allocation2 + $0x8] sm:$0xff] %vm31, %v190
    // Predicated region
    $region22: #{tpu_custom_call.1} parent=1 // pred_check
      _
    $region23: #{tpu_custom_call.1} parent=1 // pred_check_branch
      %195 = sbr.rel (0) target = $region25
    $region24: #{tpu_custom_call.1} parent=1 // pred_region
      %197 = vsyncadd [#allocation3], 0
      %s198 = sshll.u32 [#allocation2], 4
      %s199 = int_to_ptr.vmem [resolvable:$true] %s198
      %s200 = sshll.u32 %s5, 4
      %s201 = int_to_ptr.hbm [resolvable:$true] %s200
      %206 = dma.vmem_to_hbm [thread:$0]  %s199, 256, %s201, [#allocation3], 128, 128, 8
    $region25: #{tpu_custom_call.1} parent=1 // pred_fallthru
      _
    // Predicated region
    $region26: #{tpu_custom_call.1} parent=1 // pred_check
      _
    $region27: #{tpu_custom_call.1} parent=1 // pred_check_branch
      %208 = sbr.rel (0) target = $region29
    $region28: #{tpu_custom_call.1} parent=1 // pred_region
      %210 = dma.done [#allocation3], 256
    $region29: #{tpu_custom_call.1} parent=1 // pred_fallthru
      _
    %211 = vsyncpa [#allocation3], 1

</llo_original>
